<compile_context>
chip_gen: v5e
topology: v5e:2x2
jax: 0.10.0
libtpu: 0.0.40
codegen_flags: <defaults>
</compile_context>

<pallas_src>
from typing import List

import jax
import jax.numpy as jnp
from jax.experimental import pallas as pl
from jax.experimental.pallas import tpu as pltpu


# Per-tile VMEM budget. 2 MiB/tile x (2 input bufs + 2 output bufs) = 8 MiB,
# which leaves headroom under v5e's 16 MiB default scoped-VMEM limit (and is
# trivially safe on v6e/v7x). Copy throughput plateaus near HBM roofline by
# ~1-4 MiB tiles, so larger tiles buy nothing.
_VMEM_TILE_BYTES = 2 * 1024 * 1024

# Only split a single-tile slab in two (so the "parallel" grid axis has
# something to shard across v7x's 2 TensorCores) when the slab is big enough
# that DMA time dominates the ~0.35 us per-grid-step overhead.
_MEGACORE_SPLIT_BYTES = 512 * 1024


def _identity_copy_kernel(x_ref, o_ref):
    # Straight VMEM tile copy: lane-dense (rows, 128) block -> unmasked stores.
    o_ref[...] = x_ref[...]


def _sublane_multiple(dtype) -> int:
    # Native sublane packing per vreg: 8 rows for 4-byte dtypes, 16 for 2-byte
    # (bf16/f16), 32 for 1-byte (int8/fp8).
    itemsize = jnp.dtype(dtype).itemsize
    return max(8, 32 // max(1, itemsize))


def _pallas_identity_copy(x: jnp.ndarray, *, alias_input: bool = False) -> jnp.ndarray:
    """Lane-dense Pallas identity copy of `x` (framework-parity path only)."""
    orig_shape = x.shape
    total = int(x.size)
    if total == 0 or total % 128 != 0:
        # TODO(synk): ragged (non-128-divisible) sizes would need a padded
        # slab + slice (extra HBM traffic for an identity op) — just return x.
        return x

    itemsize = jnp.dtype(x.dtype).itemsize
    sub = _sublane_multiple(x.dtype)

    rows, cols = total // 128, 128
    slab_bytes = rows * cols * itemsize

    if slab_bytes <= _VMEM_TILE_BYTES:
        if slab_bytes >= _MEGACORE_SPLIT_BYTES and rows >= 2 * sub:
            # Force >=2 grid steps so megacore (v7x) can split the copy.
            half = -(-rows // 2)
            tile_rows = min(rows, ((half + sub - 1) // sub) * sub)
        else:
            tile_rows = rows  # tiny input: single grid step, no split overhead
    else:
        # Largest sublane-native row tile that fits the VMEM budget.
        tile_rows = max(sub, (_VMEM_TILE_BYTES // (cols * itemsize)) // sub * sub)

    flat = x.reshape(rows, cols)
    grid_rows = pl.cdiv(rows, tile_rows)

    extra_kwargs = {}
    if alias_input:
        # Output reuses the input HBM buffer (fully effective when the caller
        # donates the input at the jit boundary).
        extra_kwargs["input_output_aliases"] = {0: 0}

    out_flat = pl.pallas_call(
        _identity_copy_kernel,
        out_shape=jax.ShapeDtypeStruct((rows, cols), x.dtype),
        grid=(grid_rows,),
        in_specs=[pl.BlockSpec((tile_rows, cols), lambda i: (i, 0))],
        out_specs=pl.BlockSpec((tile_rows, cols), lambda i: (i, 0)),
        compiler_params=pltpu.CompilerParams(
            # Independent row tiles -> shard across the 2 TCs on v7x.
            dimension_semantics=("parallel",),
        ),
        cost_estimate=pl.CostEstimate(
            flops=0, transcendentals=0, bytes_accessed=2 * total * itemsize),
        **extra_kwargs,
    )(flat)

    return out_flat.reshape(orig_shape)


def sample_model_forward(x: jnp.ndarray, *, use_pallas_copy: bool = False,
                         alias_input: bool = False) -> jnp.ndarray:
    """Identity forward pass of SampleModel.

    Default (optimal) path returns `x` directly: zero data movement.  The
    Pallas copy kernel is only issued when `use_pallas_copy=True` (framework
    parity / benchmarking), structured as a lane-dense near-roofline copy.
    """
    if not use_pallas_copy:
        return x
    return _pallas_identity_copy(x, alias_input=alias_input)


class SampleModelPallas:
    """JAX/Pallas port of SampleModel (forward is identity)."""

    def __init__(self, channels: List[int], kernel_size: List[int],
                 use_pallas_copy: bool = False) -> None:
        # cnn_1 config is recorded but its parameters are intentionally NOT
        # materialized: the reference forward() never invokes cnn_1.
        # TODO(synk): cnn_1 (SequentialCNN) is unused by the reference forward;
        # no conv kernel is emitted on purpose.
        self.channels = list(channels)
        self.kernel_size = list(kernel_size)
        self.use_pallas_copy = use_pallas_copy

    def __call__(self, x: jnp.ndarray) -> jnp.ndarray:
        return sample_model_forward(x, use_pallas_copy=self.use_pallas_copy)


if __name__ == "__main__":
    key = jax.random.PRNGKey(0)
    # Small NCHW input consistent with a conv-style module: batch=2, C=4, 16x16.
    x = jax.random.normal(key, (2, 4, 16, 16), dtype=jnp.float32)

    # 1) Default (optimal) path: identity == return x, zero data movement.
    model = SampleModelPallas(channels=[4, 8, 16], kernel_size=[3, 3])
    y_fast = jax.block_until_ready(model(x))
    assert y_fast.shape == x.shape and y_fast.dtype == x.dtype
    assert bool(jnp.all(y_fast == x))

    # 2) Framework-parity path: run the Pallas copy kernel once.
    model_copy = SampleModelPallas(channels=[4, 8, 16], kernel_size=[3, 3],
                                   use_pallas_copy=True)
    y_copy = jax.block_until_ready(model_copy(x))
    assert y_copy.shape == x.shape and y_copy.dtype == x.dtype
    assert bool(jnp.all(y_copy == x))

    # 3) Same kernel with the output aliased onto the input HBM buffer.
    y_alias = jax.block_until_ready(
        sample_model_forward(x, use_pallas_copy=True, alias_input=True))
    assert y_alias.shape == x.shape and y_alias.dtype == x.dtype
    assert bool(jnp.all(y_alias == x))

    print("KERNEL_OK")
</pallas_src>

<mosaic_0001>
module attributes {stable_mosaic.version = 11 : i64} {
  func.func @_identity_copy_kernel(%arg0: i32, %arg1: memref<16x128xf32, #tpu.memory_space<vmem>>, %arg2: memref<16x128xf32, #tpu.memory_space<vmem>>) attributes {dimension_semantics = [#tpu.dimension_semantics<parallel>], iteration_bounds = array<i64: 1>, scalar_prefetch = 0 : i64, scratch_operands = 0 : i64, tpu.core_type = #tpu.core_type<tc>, window_params = [{transform_indices = @transform_0, window_bounds = array<i64: 16, 128>}, {transform_indices = @transform_1, window_bounds = array<i64: 16, 128>}]} {
    %c0 = arith.constant 0 : index
    %c0_0 = arith.constant 0 : index
    %0 = vector.load %arg1[%c0, %c0_0] : memref<16x128xf32, #tpu.memory_space<vmem>>, vector<16x128xf32>
    %c0_1 = arith.constant 0 : index
    %c0_2 = arith.constant 0 : index
    %1 = vector.load %arg2[%c0_1, %c0_2] : memref<16x128xf32, #tpu.memory_space<vmem>>, vector<16x128xf32>
    tpu.vector_store %arg2[%c0_1, %c0_2], %0 {strides = array<i32>} : memref<16x128xf32, #tpu.memory_space<vmem>>, vector<16x128xf32>,
    return
  }
  func.func @transform_0(%arg0: i32) -> (i32, i32) {
    %c0_i32 = arith.constant 0 : i32
    %c0_i32_0 = arith.constant 0 : i32
    return %arg0, %c0_i32 : i32, i32
  }
  func.func @transform_1(%arg0: i32) -> (i32, i32) {
    %c0_i32 = arith.constant 0 : i32
    %c0_i32_0 = arith.constant 0 : i32
    return %arg0, %c0_i32 : i32, i32
  }
}

</mosaic_0001>

<llo_original>
// kernel: tpu_custom_call.1
$region0: #{tpu_custom_call.1}
  #allocation0 [shape = 'u32[]', space=smem, size = 0x4, offset = 0x4, fixed_abs, tag = 'smem constant byte address 0x4 - core index']
  #allocation1 [shape = 'u32[72,128]{1,0:T(1,128)}', space=vmem, size = 0x9000, scoped, tag = 'internal scratch']
  %s0 = inlined_call_operand.hbm [shape: f32[16,128], index: 0, kind: input, shape index: {}]
  %s1 = inlined_call_operand.hbm [shape: f32[16,128], index: 1, kind: output, shape index: {}]
  %s2 = sld [smem:[#allocation0]]
  $region18: #{tpu_custom_call.1} parent=0
    _
  %s4 = ssub.s32 1, %s2
  %s5 = scalar_select 0, %s4, %s2
  $region1: #{tpu_custom_call.1} parent=0
    #allocation2 [shape = 'u8[8192]{0}', space=vmem, size = 0x2000, scoped, tag = 'input window, operand 0, single buffered']
    #allocation3 [shape = 's32[1]{0}', space=sflag, size = 0x4, scoped, tag = 'scoped memory for tpu_custom_call.1']
    #allocation4 [shape = 's32[1]{0}', space=sflag, size = 0x4, scoped, tag = 'scoped memory for tpu_custom_call.1']
    #allocation5 [shape = 'u8[8192]{0}', space=vmem, size = 0x2000, scoped, tag = 'output window, operand 0, single buffered']
    %6 = vsyncpa [#allocation3], 0
    %7 = vsyncpa [#allocation4], 0
    // Predicated region
    $region2: #{tpu_custom_call.1} parent=1 // pred_check
      _
    $region3: #{tpu_custom_call.1} parent=1 // pred_check_branch
      %9 = sbr.rel (0) target = $region5
    $region4: #{tpu_custom_call.1} parent=1 // pred_region
      %11 = vsyncadd [#allocation3], 0
      %s12 = sshll.u32 %s0, 4
      %s13 = int_to_ptr.hbm [resolvable:$true] %s12
      %s14 = sshll.u32 [#allocation2], 4
      %s15 = int_to_ptr.vmem [resolvable:$true] %s14
      %20 = dma.hbm_to_vmem [thread:$0]  %s13, 256, %s15, [#allocation3], 128, 128, 8
    $region5: #{tpu_custom_call.1} parent=1 // pred_fallthru
      _
    // Predicated region
    $region6: #{tpu_custom_call.1} parent=1 // pred_check
      _
    $region7: #{tpu_custom_call.1} parent=1 // pred_check_branch
      %22 = sbr.rel (0) target = $region9
    $region8: #{tpu_custom_call.1} parent=1 // pred_region
      %24 = dma.done [#allocation3], 256
    $region9: #{tpu_custom_call.1} parent=1 // pred_fallthru
      _
    %v25 = vld [vmem:[#allocation2] sm:$0xff]
    %v26 = vld [vmem:[#allocation2 + $0x8] sm:$0xff]
    %27 = vst [vmem:[#allocation5] sm:$0xff] %v25
    %28 = vst [vmem:[#allocation5 + $0x8] sm:$0xff] %v26
    // Predicated region
    $region10: #{tpu_custom_call.1} parent=1 // pred_check
      _
    $region11: #{tpu_custom_call.1} parent=1 // pred_check_branch
      %30 = sbr.rel (0) target = $region13
    $region12: #{tpu_custom_call.1} parent=1 // pred_region
      %32 = vsyncadd [#allocation4], 0
      %s33 = sshll.u32 [#allocation5], 4
      %s34 = int_to_ptr.vmem [resolvable:$true] %s33
      %s35 = sshll.u32 %s1, 4
      %s36 = int_to_ptr.hbm [resolvable:$true] %s35
      %41 = dma.vmem_to_hbm [thread:$0]  %s34, 256, %s36, [#allocation4], 128, 128, 8
    $region13: #{tpu_custom_call.1} parent=1 // pred_fallthru
      _
    // Predicated region
    $region14: #{tpu_custom_call.1} parent=1 // pred_check
      _
    $region15: #{tpu_custom_call.1} parent=1 // pred_check_branch
      %43 = sbr.rel (0) target = $region17
    $region16: #{tpu_custom_call.1} parent=1 // pred_region
      %45 = dma.done [#allocation4], 256
    $region17: #{tpu_custom_call.1} parent=1 // pred_fallthru
      _
    %46 = vsyncpa [#allocation3], 1
    %47 = vsyncpa [#allocation4], 1

</llo_original>
